<compile_context>
chip_gen: v7x
topology: tpu7x:2x2x1
jax: 0.10.0
libtpu: 0.0.40
codegen_flags: <defaults>
</compile_context>

<pallas_src>
import functools

import jax
import jax.numpy as jnp
from jax.experimental import pallas as pl
from jax.experimental.pallas import tpu as pltpu

KH = KW = 3          # kernel_size
PAD = 1              # padding
STRIDE = 1           # stride (only 1 supported here)
SUBLANES = 8         # f32 sublane tile — Cin is padded so patch slabs are aligned


def _conv3x3_relu_kernel(x_ref, w_ref, o_ref, *, height, width):
    """One image: out(Cout, H*W) = ReLU( W(Cout, K) @ patch(K, H*W) ).

    x_ref: (1, Cin_p, L)   compute dtype; rows zero-padded top+bottom, flattened
                           to length (H+2)*W, plus a 1-element guard each end.
    w_ref: (Cout, K)       K = KH*KW*Cin_p, ordered (kh, kw, ci).
    o_ref: (1, Cout, H*W)  f32, lane-dense (H*W on lanes).
    """
    hw = height * width

    # Load the flattened image once; build the patch matrix in f32 registers.
    xv = x_ref[0].astype(jnp.float32)                           # (Cin_p, L)

    # Column index of every output position (2-D iota over the lane axis).
    col = jax.lax.broadcasted_iota(jnp.int32, (1, hw), 1) % width
    not_first_col = col != 0
    not_last_col = col != (width - 1)

    # Rows are flattened with stride W, so tap (kh, kw) of the 3x3 stencil is a
    # uniform lane shift of the flat vector by kh*W + kw; only left/right halo
    # columns need masking (top/bottom halo rows are real zero rows).
    slabs = []
    for kh in range(KH):
        for kw in range(KW):
            start = kh * width + kw
            sl = xv[:, start:start + hw]                        # (Cin_p, H*W)
            if kw == 0:
                sl = jnp.where(not_first_col, sl, 0.0)
            elif kw == KW - 1:
                sl = jnp.where(not_last_col, sl, 0.0)
            slabs.append(sl)

    # (K, H*W) patch matrix -> one MXU GEMM instead of 9 tiny K=Cin ones.
    patch = jnp.concatenate(slabs, axis=0).astype(w_ref.dtype)
    acc = jnp.dot(w_ref[...], patch, preferred_element_type=jnp.float32)

    # Fused ReLU epilogue in f32; lane-dense store (last dim = H*W).
    o_ref[...] = jnp.maximum(acc, 0.0)[None].astype(o_ref.dtype)


def basic_conv_forward(x_nchw, weight_oihw, *, compute_dtype=jnp.bfloat16):
    """ReLU(Conv2d(x)) with kernel=3, stride=1, pad=1, no bias (BasicConv default).

    x_nchw:      (N, Cin, H, W)    float32 (PyTorch NCHW layout)
    weight_oihw: (Cout, Cin, 3, 3) float32 (PyTorch Conv2d weight layout)
    returns:     (N, Cout, H, W)   float32
    """
    N, cin, H, W = x_nchw.shape
    cout = weight_oihw.shape[0]
    hw = H * W
    hp = H + 2 * PAD

    # Pad Cin to the f32 sublane tile so in-kernel tap slabs concatenate on
    # aligned sublane boundaries (zero channels contribute nothing).
    cin_p = -(-cin // SUBLANES) * SUBLANES

    # Lane-dense input prep (layout plumbing only, no compute): pad rows
    # (top/bottom halo), flatten (H,W)->H*W so every tap is a uniform lane
    # shift, add a 1-element guard so all 9 shifted windows stay in bounds,
    # pad channels. No full 2D padded copy, no NHWC transpose.
    x = x_nchw.astype(compute_dtype)
    x = jnp.pad(x, ((0, 0), (0, 0), (PAD, PAD), (0, 0)))        # (N, Cin, H+2, W)
    x = x.reshape(N, cin, hp * W)
    x = jnp.pad(x, ((0, 0), (0, cin_p - cin), (1, 1)))          # (N, Cin_p, L)
    L = hp * W + 2

    # Weight (Cout, Cin, KH, KW) -> (Cout, K), K ordered (kh, kw, ci) to match
    # the in-kernel patch matrix row ordering.
    K = KH * KW * cin_p
    w = jnp.pad(weight_oihw, ((0, 0), (0, cin_p - cin), (0, 0), (0, 0)))
    w_mat = jnp.transpose(w, (0, 2, 3, 1)).reshape(cout, K).astype(compute_dtype)

    kernel = functools.partial(_conv3x3_relu_kernel, height=H, width=W)

    out_flat = pl.pallas_call(
        kernel,
        out_shape=jax.ShapeDtypeStruct((N, cout, hw), x_nchw.dtype),
        grid_spec=pltpu.PrefetchScalarGridSpec(
            num_scalar_prefetch=0,
            grid=(N,),   # one image per step; "parallel" -> one image per TC on v7x
            in_specs=[
                pl.BlockSpec((1, cin_p, L), lambda n: (n, 0, 0)),
                pl.BlockSpec((cout, K), lambda n: (0, 0)),
            ],
            out_specs=pl.BlockSpec((1, cout, hw), lambda n: (n, 0, 0)),
        ),
        compiler_params=pltpu.CompilerParams(
            dimension_semantics=("parallel",)),
    )(x, w_mat)

    # (N, Cout, H*W) -> (N, Cout, H, W): contiguous reshape, no transpose.
    return out_flat.reshape(N, cout, H, W)


def reference_forward(x_nchw, weight_oihw, *, compute_dtype=jnp.bfloat16):
    """Pure-JAX reference of ReLU(Conv2d) with the same bf16-in / f32-acc math."""
    y = jax.lax.conv_general_dilated(
        x_nchw.astype(compute_dtype), weight_oihw.astype(compute_dtype),
        window_strides=(STRIDE, STRIDE),
        padding=((PAD, PAD), (PAD, PAD)),
        dimension_numbers=("NCHW", "OIHW", "NCHW"),
        preferred_element_type=jnp.float32)
    return jnp.maximum(y, 0.0).astype(x_nchw.dtype)


if __name__ == "__main__":
    key = jax.random.PRNGKey(0)
    kx, kw_key = jax.random.split(key)

    # Small shapes consistent with BasicConv(in_planes=4, out_planes=8, kernel_size=3)
    N, Cin, H, W = 2, 4, 16, 16
    Cout = 8

    x = jax.random.normal(kx, (N, Cin, H, W), dtype=jnp.float32)
    # Deterministic weight init (kaiming-uniform-ish scale), no bias (bias=False).
    fan_in = Cin * KH * KW
    bound = 1.0 / (fan_in ** 0.5)
    weight = jax.random.uniform(kw_key, (Cout, Cin, KH, KW),
                                minval=-bound, maxval=bound, dtype=jnp.float32)

    out = basic_conv_forward(x, weight)
    out = jax.block_until_ready(out)

    ref = reference_forward(x, weight)
    assert out.shape == (N, Cout, H, W)
    assert jnp.allclose(out, ref, atol=1e-2, rtol=1e-2), "mismatch vs reference conv"

    print("KERNEL_OK")
</pallas_src>

<mosaic_0001>
module attributes {stable_mosaic.version = 11 : i64} {
  func.func @_conv3x3_relu_kernel(%arg0: i32, %arg1: memref<1x8x290xbf16, #tpu.memory_space<vmem>>, %arg2: memref<8x72xbf16, #tpu.memory_space<vmem>>, %arg3: memref<1x8x256xf32, #tpu.memory_space<vmem>>) attributes {dimension_semantics = [#tpu.dimension_semantics<parallel>], iteration_bounds = array<i64: 2>, scalar_prefetch = 0 : i64, scratch_operands = 0 : i64, tpu.core_type = #tpu.core_type<tc>, window_params = [{transform_indices = @transform_0, window_bounds = array<i64: 1, 8, 290>}, {pipeline_mode = #tpu.pipeline_mode<synchronous>, transform_indices = @transform_1, window_bounds = array<i64: 8, 72>}, {transform_indices = @transform_2, window_bounds = array<i64: 1, 8, 256>}]} {
    %c0 = arith.constant 0 : index
    %c0_0 = arith.constant 0 : index
    %c0_1 = arith.constant 0 : index
    %0 = vector.load %arg1[%c0, %c0_0, %c0_1] : memref<1x8x290xbf16, #tpu.memory_space<vmem>>, vector<1x8x290xbf16>
    %1 = vector.shape_cast %0 : vector<1x8x290xbf16> to vector<8x290xbf16>
    %2 = arith.extf %1 : vector<8x290xbf16> to vector<8x290xf32>
    %3 = tpu.iota {dimensions = array<i32: 1>} : vector<1x256xi32>
    %c16_i32 = arith.constant 16 : i32
    %c0_i32 = arith.constant 0 : i32
    %4 = arith.cmpi eq, %c16_i32, %c0_i32 : i32
    %c1_i32 = arith.constant 1 : i32
    %5 = arith.select %4, %c1_i32, %c16_i32 : i32
    %6 = vector.broadcast %5 : i32 to vector<1x256xi32>
    %7 = arith.remsi %3, %6 : vector<1x256xi32>
    %c0_i32_2 = arith.constant 0 : i32
    %8 = vector.broadcast %c0_i32_2 : i32 to vector<1x256xi32>
    %9 = arith.cmpi ne, %7, %8 : vector<1x256xi32>
    %c0_i32_3 = arith.constant 0 : i32
    %10 = vector.broadcast %c0_i32_3 : i32 to vector<1x256xi32>
    %11 = arith.cmpi slt, %7, %10 : vector<1x256xi32>
    %c0_i32_4 = arith.constant 0 : i32
    %12 = arith.cmpi slt, %5, %c0_i32_4 : i32
    %13 = vector.broadcast %12 : i1 to vector<1x256xi1>
    %14 = vector.broadcast %13 : vector<1x256xi1> to vector<1x256xi1>
    %15 = arith.xori %11, %14 : vector<1x256xi1>
    %16 = arith.andi %15, %9 : vector<1x256xi1>
    %17 = vector.broadcast %5 : i32 to vector<1x256xi32>
    %18 = arith.addi %7, %17 : vector<1x256xi32>
    %19 = arith.select %16, %18, %7 : vector<1x256xi1>, vector<1x256xi32>
    %c0_i32_5 = arith.constant 0 : i32
    %20 = vector.broadcast %c0_i32_5 : i32 to vector<1x256xi32>
    %21 = arith.cmpi ne, %19, %20 : vector<1x256xi32>
    %c15_i32 = arith.constant 15 : i32
    %22 = vector.broadcast %c15_i32 : i32 to vector<1x256xi32>
    %23 = arith.cmpi ne, %19, %22 : vector<1x256xi32>
    %24 = vector.extract_strided_slice %2 {offsets = [0, 0], sizes = [8, 256], strides = [1, 1]} : vector<8x290xf32> to vector<8x256xf32>
    %cst = arith.constant 0.000000e+00 : f32
    %25 = vector.shape_cast %21 : vector<1x256xi1> to vector<1x256xi1>
    %26 = vector.broadcast %25 : vector<1x256xi1> to vector<8x256xi1>
    %27 = vector.broadcast %cst : f32 to vector<8x256xf32>
    %28 = arith.select %26, %24, %27 : vector<8x256xi1>, vector<8x256xf32>
    %29 = vector.extract_strided_slice %2 {offsets = [0, 1], sizes = [8, 256], strides = [1, 1]} : vector<8x290xf32> to vector<8x256xf32>
    %30 = vector.extract_strided_slice %2 {offsets = [0, 2], sizes = [8, 256], strides = [1, 1]} : vector<8x290xf32> to vector<8x256xf32>
    %cst_6 = arith.constant 0.000000e+00 : f32
    %31 = vector.shape_cast %23 : vector<1x256xi1> to vector<1x256xi1>
    %32 = vector.broadcast %31 : vector<1x256xi1> to vector<8x256xi1>
    %33 = vector.broadcast %cst_6 : f32 to vector<8x256xf32>
    %34 = arith.select %32, %30, %33 : vector<8x256xi1>, vector<8x256xf32>
    %35 = vector.extract_strided_slice %2 {offsets = [0, 16], sizes = [8, 256], strides = [1, 1]} : vector<8x290xf32> to vector<8x256xf32>
    %cst_7 = arith.constant 0.000000e+00 : f32
    %36 = vector.shape_cast %21 : vector<1x256xi1> to vector<1x256xi1>
    %37 = vector.broadcast %36 : vector<1x256xi1> to vector<8x256xi1>
    %38 = vector.broadcast %cst_7 : f32 to vector<8x256xf32>
    %39 = arith.select %37, %35, %38 : vector<8x256xi1>, vector<8x256xf32>
    %40 = vector.extract_strided_slice %2 {offsets = [0, 17], sizes = [8, 256], strides = [1, 1]} : vector<8x290xf32> to vector<8x256xf32>
    %41 = vector.extract_strided_slice %2 {offsets = [0, 18], sizes = [8, 256], strides = [1, 1]} : vector<8x290xf32> to vector<8x256xf32>
    %cst_8 = arith.constant 0.000000e+00 : f32
    %42 = vector.shape_cast %23 : vector<1x256xi1> to vector<1x256xi1>
    %43 = vector.broadcast %42 : vector<1x256xi1> to vector<8x256xi1>
    %44 = vector.broadcast %cst_8 : f32 to vector<8x256xf32>
    %45 = arith.select %43, %41, %44 : vector<8x256xi1>, vector<8x256xf32>
    %46 = vector.extract_strided_slice %2 {offsets = [0, 32], sizes = [8, 256], strides = [1, 1]} : vector<8x290xf32> to vector<8x256xf32>
    %cst_9 = arith.constant 0.000000e+00 : f32
    %47 = vector.shape_cast %21 : vector<1x256xi1> to vector<1x256xi1>
    %48 = vector.broadcast %47 : vector<1x256xi1> to vector<8x256xi1>
    %49 = vector.broadcast %cst_9 : f32 to vector<8x256xf32>
    %50 = arith.select %48, %46, %49 : vector<8x256xi1>, vector<8x256xf32>
    %51 = vector.extract_strided_slice %2 {offsets = [0, 33], sizes = [8, 256], strides = [1, 1]} : vector<8x290xf32> to vector<8x256xf32>
    %52 = vector.extract_strided_slice %2 {offsets = [0, 34], sizes = [8, 256], strides = [1, 1]} : vector<8x290xf32> to vector<8x256xf32>
    %cst_10 = arith.constant 0.000000e+00 : f32
    %53 = vector.shape_cast %23 : vector<1x256xi1> to vector<1x256xi1>
    %54 = vector.broadcast %53 : vector<1x256xi1> to vector<8x256xi1>
    %55 = vector.broadcast %cst_10 : f32 to vector<8x256xf32>
    %56 = arith.select %54, %52, %55 : vector<8x256xi1>, vector<8x256xf32>
    %57 = tpu.concatenate %28, %29, %34, %39, %40, %45, %50, %51, %56 in 0 : vector<8x256xf32>, vector<8x256xf32>, vector<8x256xf32>, vector<8x256xf32>, vector<8x256xf32>, vector<8x256xf32>, vector<8x256xf32>, vector<8x256xf32>, vector<8x256xf32> -> vector<72x256xf32>
    %58 = arith.truncf %57 : vector<72x256xf32> to vector<72x256xbf16>
    %c0_11 = arith.constant 0 : index
    %c0_12 = arith.constant 0 : index
    %59 = vector.load %arg2[%c0_11, %c0_12] : memref<8x72xbf16, #tpu.memory_space<vmem>>, vector<8x72xbf16>
    %cst_13 = arith.constant dense<0.000000e+00> : vector<8x256xf32>
    %60 = tpu.matmul %59, %58, %cst_13 {dimension_numbers = #tpu.dot_dimension_numbers<[1], [0], [0], [1], [0, 0, 1, 1], [], []>} : vector<8x72xbf16>, vector<72x256xbf16>, vector<8x256xf32> -> vector<8x256xf32>
    %cst_14 = arith.constant 0.000000e+00 : f32
    %61 = vector.broadcast %cst_14 : f32 to vector<8x256xf32>
    %62 = arith.maximumf %60, %61 : vector<8x256xf32>
    %63 = vector.shape_cast %62 : vector<8x256xf32> to vector<1x8x256xf32>
    %c0_15 = arith.constant 0 : index
    %c0_16 = arith.constant 0 : index
    %c0_17 = arith.constant 0 : index
    %64 = vector.load %arg3[%c0_15, %c0_16, %c0_17] : memref<1x8x256xf32, #tpu.memory_space<vmem>>, vector<1x8x256xf32>
    tpu.vector_store %arg3[%c0_15, %c0_16, %c0_17], %63 {strides = array<i32>} : memref<1x8x256xf32, #tpu.memory_space<vmem>>, vector<1x8x256xf32>,
    return
  }
  func.func @transform_0(%arg0: i32) -> (i32, i32, i32) {
    %c0_i32 = arith.constant 0 : i32
    %c0_i32_0 = arith.constant 0 : i32
    %c0_i32_1 = arith.constant 0 : i32
    return %arg0, %c0_i32, %c0_i32_0 : i32, i32, i32
  }
  func.func @transform_1(%arg0: i32) -> (i32, i32) {
    %c0_i32 = arith.constant 0 : i32
    %c0_i32_0 = arith.constant 0 : i32
    %c0_i32_1 = arith.constant 0 : i32
    return %c0_i32, %c0_i32_0 : i32, i32
  }
  func.func @transform_2(%arg0: i32) -> (i32, i32, i32) {
    %c0_i32 = arith.constant 0 : i32
    %c0_i32_0 = arith.constant 0 : i32
    %c0_i32_1 = arith.constant 0 : i32
    return %arg0, %c0_i32, %c0_i32_0 : i32, i32, i32
  }
}

</mosaic_0001>

<llo_original>
// kernel: tpu_custom_call.1
$region0: #{tpu_custom_call.1}
  #allocation0 [shape = 'u32[]', space=smem, size = 0x4, offset = 0x4, fixed_abs, tag = 'smem constant byte address 0x4 - core index']
  #allocation1 [shape = 'u32[144,128]{1,0:T(1,128)}', space=vmem, size = 0x12000, scoped, tag = 'internal scratch']
  %s0 = inlined_call_operand.hbm [shape: bf16[2,8,290], index: 0, kind: input, shape index: {}]
  %s1 = inlined_call_operand.hbm [shape: bf16[8,72], index: 1, kind: input, shape index: {}]
  %s2 = inlined_call_operand.hbm [shape: f32[2,8,256], index: 2, kind: output, shape index: {}]
  %s3 = sld [smem:[#allocation0]]
  $region49: #{tpu_custom_call.1} parent=0
    _
  %s5 = ssub.s32 1, %s3
  %s6 = scalar_select 0, %s5, %s3
  $region1: #{tpu_custom_call.1} parent=0
    #allocation2 [shape = 'u8[12288]{0}', space=vmem, size = 0x3000, scoped, tag = 'input window, operand 0']
    #allocation3 [shape = 's32[2]{0}', space=sflag, size = 0x8, scoped, tag = 'scoped memory for tpu_custom_call.1']
    #allocation4 [shape = 's32[2]{0}', space=sflag, size = 0x8, scoped, tag = 'scoped memory for tpu_custom_call.1']
    #allocation5 [shape = 'u8[2048]{0}', space=vmem, size = 0x800, scoped, tag = 'input window, operand 1, single buffered']
    #allocation6 [shape = 's32[1]{0}', space=sflag, size = 0x4, scoped, tag = 'scoped memory for tpu_custom_call.1']
    #allocation7 [shape = 'u8[16384]{0}', space=vmem, size = 0x4000, scoped, tag = 'output window, operand 0']
    %7 = vsyncpa [#allocation3], 0
    %s8 = scalar_lea.sflag [#allocation3], 1
    %9 = vsyncpa %s8, 0
    %10 = vsyncpa [#allocation6], 0
    %11 = vsyncpa [#allocation4], 0
    %s12 = scalar_lea.sflag [#allocation4], 1
    %13 = vsyncpa %s12, 0
    loop: start=0, step=1, limit=4
    $region2: #{tpu_custom_call.1} parent=1 // loop_pre_header
      _
    $region3: #{tpu_custom_call.1} parent=1 // loop_header
      %s15 = sphi 0, %s19
      %p16 = scmp.ge.s32.totalorder %s15, 4
      %s25 = sphi 0, %s27
      %s28 = sphi 0, %s25
      %s29 = sphi 0, %s28
      %s45 = sphi 0, %s29
      %s49 = sphi 0, %s49
      %s51 = sphi 0, %s49
      %s52 = sphi 0, %s51
      %s66 = sphi 0, %s52
      %s72 = sphi 0, %s74
      %s75 = sphi 0, %s72
      %s76 = sphi 0, %s75
      %s92 = sphi 0, %s76
    $region4: #{tpu_custom_call.1} parent=1 // loop_header_branch
      %18 = sbr.rel (%p16) target = $region8
    $region5: #{tpu_custom_call.1} parent=1 // loop_body
      %s20 = ssub.s32 %s15, 1
      %s21 = ssub.s32 %s15, 2
      %s22 = sadd.s32 %s15, 1
      %s23 = ssub.s32 %s15, %s22
      %p24 = scmp.eq.s32.totalorder %s23, 0
      %s26 = sadd.s32 %s25, 1
      %s27 = scalar_select %p24, %s25, %s26
      %p30 = pneg %p24
      %p31 = scmp.eq.s32.totalorder %s15, 1
      %p32 = por %p30, %p31
      %p33 = scmp.ne.s32.totalorder %s25, %s28
      %p34 = scmp.eq.s32.totalorder %s15, 0
      %p35 = por %p33, %p34
      %p36 = scmp.ne.s32.totalorder %s25, %s28
      %p37 = scmp.eq.s32.totalorder %s20, 1
      %p38 = por %p36, %p37
      %p39 = scmp.ne.s32.totalorder %s28, %s29
      %p40 = scmp.eq.s32.totalorder %s20, 0
      %p41 = por %p39, %p40
      %p42 = scmp.ne.s32.totalorder %s28, %s29
      %p43 = scmp.eq.s32.totalorder %s21, 1
      %p44 = por %p42, %p43
      %p46 = scmp.ne.s32.totalorder %s29, %s45
      %p47 = scmp.eq.s32.totalorder %s21, 0
      %p48 = por %p46, %p47
      %s50 = sadd.s32 %s49, 1
      %p53 = scmp.eq.s32.totalorder %s15, 1
      %p54 = scmp.ne.s32.totalorder %s49, %s51
      %p55 = scmp.eq.s32.totalorder %s15, 0
      %p56 = por %p54, %p55
      %p57 = scmp.ne.s32.totalorder %s49, %s51
      %p58 = scmp.eq.s32.totalorder %s20, 1
      %p59 = por %p57, %p58
      %p60 = scmp.ne.s32.totalorder %s51, %s52
      %p61 = scmp.eq.s32.totalorder %s20, 0
      %p62 = por %p60, %p61
      %p63 = scmp.ne.s32.totalorder %s51, %s52
      %p64 = scmp.eq.s32.totalorder %s21, 1
      %p65 = por %p63, %p64
      %p67 = scmp.ne.s32.totalorder %s52, %s66
      %p68 = scmp.eq.s32.totalorder %s21, 0
      %p69 = por %p67, %p68
      %s70 = ssub.s32 %s15, %s22
      %p71 = scmp.eq.s32.totalorder %s70, 0
      %s73 = sadd.s32 %s72, 1
      %s74 = scalar_select %p71, %s72, %s73
      %p77 = pneg %p71
      %p78 = scmp.eq.s32.totalorder %s15, 1
      %p79 = por %p77, %p78
      %p80 = scmp.ne.s32.totalorder %s72, %s75
      %p81 = scmp.eq.s32.totalorder %s15, 0
      %p82 = por %p80, %p81
      %p83 = scmp.ne.s32.totalorder %s72, %s75
      %p84 = scmp.eq.s32.totalorder %s20, 1
      %p85 = por %p83, %p84
      %p86 = scmp.ne.s32.totalorder %s75, %s76
      %p87 = scmp.eq.s32.totalorder %s20, 0
      %p88 = por %p86, %p87
      %p89 = scmp.ne.s32.totalorder %s75, %s76
      %p90 = scmp.eq.s32.totalorder %s21, 1
      %p91 = por %p89, %p90
      %p93 = scmp.ne.s32.totalorder %s76, %s92
      %p94 = scmp.eq.s32.totalorder %s21, 0
      %p95 = por %p93, %p94
      %p96 = scmp.le.s32.totalorder 1, %s15
      %p97 = scmp.lt.s32.totalorder %s15, 3
      %p98 = pnand %p96, %p97
      %p99 = pneg %p98
      // Predicated region
      $region9: #{tpu_custom_call.1} parent=5 // pred_check
        _
      $region10: #{tpu_custom_call.1} parent=5 // pred_check_branch
        %101 = sbr.rel (%p98) target = $region12
      $region11: #{tpu_custom_call.1} parent=5 // pred_region
        %s102 = ssub.s32 %s15, 1
        // Predicated region
        $region13: #{tpu_custom_call.1} parent=11 // pred_check
          %p103 = pneg %p62
        $region14: #{tpu_custom_call.1} parent=11 // pred_check_branch
          %105 = sbr.rel (%p103) target = $region16
        $region15: #{tpu_custom_call.1} parent=11 // pred_region
          %s107 = ssub.s32 64, 64
          %108 = vsyncadd [#allocation6], %s107
          %s110 = sshll.u32 [#allocation5], 4
          %s111 = int_to_ptr.vmem [resolvable:$true] %s110
          %113 = dma.hbm_to_vmem [thread:$0]  %s1, 64, %s111, [#allocation6]
        $region16: #{tpu_custom_call.1} parent=11 // pred_fallthru
          _
      $region12: #{tpu_custom_call.1} parent=5 // pred_fallthru
        _
      %p114 = scmp.lt.s32.totalorder %s15, 2
      // Predicated region
      $region17: #{tpu_custom_call.1} parent=5 // pred_check
        %p115 = pneg %p114
      $region18: #{tpu_custom_call.1} parent=5 // pred_check_branch
        %117 = sbr.rel (%p115) target = $region20
      $region19: #{tpu_custom_call.1} parent=5 // pred_region
        // Predicated region
        $region21: #{tpu_custom_call.1} parent=19 // pred_check
          %p118 = pneg %p35
        $region22: #{tpu_custom_call.1} parent=19 // pred_check_branch
          %120 = sbr.rel (%p118) target = $region24
        $region23: #{tpu_custom_call.1} parent=19 // pred_region
          %s121 = sand.u32 %s25, 1
          %s122 = scalar_lea.sflag [#allocation3], %s121
          %s123 = sand.u32 %s25, 1
          %s124 = smul.addr %s123, 12
          %s125 = scalar_lea.vmem [#allocation2], %s124
          %s127 = ssub.s32 192, 192
          %128 = vsyncadd %s122, %s127
          %s129 = smul.addr %s15, 3
          %s130 = smul.addr %s129, 64
          %s131 = scalar_lea.hbm %s0, %s130
          %s133 = sshll.u32 %s125, 4
          %s134 = int_to_ptr.vmem [resolvable:$true] %s133
          %136 = dma.hbm_to_vmem [thread:$0]  %s131, 192, %s134, %s122
        $region24: #{tpu_custom_call.1} parent=19 // pred_fallthru
          _
      $region20: #{tpu_custom_call.1} parent=5 // pred_fallthru
        _
      %p137 = scmp.le.s32.totalorder 1, %s15
      %p138 = scmp.lt.s32.totalorder %s15, 3
      %p139 = pnand %p137, %p138
      %p140 = pneg %p139
      // Predicated region
      $region25: #{tpu_custom_call.1} parent=5 // pred_check
        _
      $region26: #{tpu_custom_call.1} parent=5 // pred_check_branch
        %142 = sbr.rel (%p139) target = $region28
      $region27: #{tpu_custom_call.1} parent=5 // pred_region
        %s143 = ssub.s32 %s15, 1
        %s144 = sand.u32 %s28, 1
        %s145 = scalar_lea.sflag [#allocation3], %s144
        %s146 = sand.u32 %s28, 1
        %s147 = smul.addr %s146, 12
        %s148 = scalar_lea.vmem [#allocation2], %s147
        // Predicated region
        $region29: #{tpu_custom_call.1} parent=27 // pred_check
          %p149 = pneg %p41
        $region30: #{tpu_custom_call.1} parent=27 // pred_check_branch
          %151 = sbr.rel (%p149) target = $region32
        $region31: #{tpu_custom_call.1} parent=27 // pred_region
          %152 = dma.done %s145, 192
        $region32: #{tpu_custom_call.1} parent=27 // pred_fallthru
          _
        // Predicated region
        $region33: #{tpu_custom_call.1} parent=27 // pred_check
          %p153 = pneg %p62
        $region34: #{tpu_custom_call.1} parent=27 // pred_check_branch
          %155 = sbr.rel (%p153) target = $region36
        $region35: #{tpu_custom_call.1} parent=27 // pred_region
          %156 = dma.done [#allocation6], 64
        $region36: #{tpu_custom_call.1} parent=27 // pred_fallthru
          _
        %s157 = sand.u32 %s28, 1
        %s158 = scalar_lea.sflag [#allocation3], %s157
        %s159 = sand.u32 %s28, 1
        %s160 = smul.addr %s159, 12
        %s161 = scalar_lea.vmem [#allocation2], %s160
        %p162 = pneg %p41
        %p163 = pneg %p38
        %p164 = pneg %p62
        %p165 = pneg %p59
        %p166 = pneg %p88
        %p167 = pneg %p85
        %s168 = sand.u32 %s75, 1
        %s169 = scalar_lea.sflag [#allocation4], %s168
        %s170 = sand.u32 %s75, 1
        %s171 = smul.addr %s170, 16
        %s172 = scalar_lea.vmem [#allocation7], %s171
        %v174 = vld [vmem:[%s148] sm:$0xff]
        %v175 = vld [vmem:[%s148 + $0x8] sm:$0xf]
        %v176 = vunpack.c.l.bf16 %v174
        %v177 = vunpack.c.h.bf16 %v174
        %v178 = vunpack.c.l.bf16 %v175
        %v179 = vlaneseq
        %v180 = vand.u32 %v179, 127
        %v181 = vadd.s32 %v180, 128
        %vm182 = vcmp.lt.s32.totalorder %v180, 0
        %v183 = vsub.s32 0, %v180
        %v184 = vsel %vm182, %v183, %v180
        %v185 = vshrl.u32 %v184, 4
        %v186 = vand.u32 %v184, 15
        %v187 = vsub.s32 0, %v186
        %v188 = vsel %vm182, %v187, %v186
        %vm189 = vcmp.lt.s32.totalorder %v181, 0
        %v190 = vsub.s32 0, %v181
        %v191 = vsel %vm189, %v190, %v181
        %v192 = vshrl.u32 %v191, 4
        %v193 = vand.u32 %v191, 15
        %v194 = vsub.s32 0, %v193
        %v195 = vsel %vm189, %v194, %v193
        %vm196 = vcmp.ne.s32.totalorder %v188, 0
        %vm197 = vcmp.ne.s32.totalorder %v195, 0
        %vm198 = vcmp.lt.s32.totalorder %v188, 0
        %vm199 = vcmp.lt.s32.totalorder %v195, 0
        %vm200 = vmand %vm198, %vm196
        %vm201 = vmand %vm199, %vm197
        %v202 = vadd.s32 %v188, 16
        %v203 = vadd.s32 %v195, 16
        %v204 = vsel %vm200, %v202, %v188
        %v205 = vsel %vm201, %v203, %v195
        %vm206 = vcmp.ne.s32.totalorder %v204, 0
        %vm207 = vcmp.ne.s32.totalorder %v205, 0
        %vm208 = vcmp.ne.s32.totalorder %v204, 15
        %vm209 = vcmp.ne.s32.totalorder %v205, 15
        %v210 = vsel %vm206, 1, 0
        %v211 = vsel %vm207, 1, 0
        %vm212 = vcmp.eq.s32.totalorder %v210, 1
        %vm213 = vcmp.eq.s32.totalorder %v211, 1
        %v214 = vsel %vm212, %v176, 0.0
        %v215 = vsel %vm213, %v177, 0.0
        %v216 = vsel %vm208, 1, 0
        %v217 = vsel %vm209, 1, 0
        %vm218 = vcmp.eq.s32.totalorder %v216, 1
        %vm219 = vcmp.eq.s32.totalorder %v217, 1
        %223 = vrot.lane.b32.xlu0 %v176, 126
        %v224 = vpop.permute.xlu0 %223
        %225 = vrot.lane.b32.xlu0 %v177, 126
        %v226 = vpop.permute.xlu0 %225
        %227 = vrot.lane.b32.xlu0 %v178, 126
        %v228 = vpop.permute.xlu0 %227
        %vm229 = vcmask 1031168
        %v230 = vsel %vm229, %v224, %v226
        %v231 = vsel %vm229, %v226, %v228
        %v234 = vsel %vm218, %v230, 0.0
        %v235 = vsel %vm219, %v231, 0.0
        %236 = vrot.lane.b32.xlu0 %v176, 112
        %v237 = vpop.permute.xlu0 %236
        %238 = vrot.lane.b32.xlu0 %v177, 112
        %v239 = vpop.permute.xlu0 %238
        %240 = vrot.lane.b32.xlu0 %v178, 112
        %v241 = vpop.permute.xlu0 %240
        %vm242 = vcmask 916480
        %v243 = vsel %vm242, %v237, %v239
        %v244 = vsel %vm242, %v239, %v241
        %v247 = vsel %vm212, %v243, 0.0
        %v248 = vsel %vm213, %v244, 0.0
        %249 = vrot.lane.b32.xlu0 %v176, 110
        %v250 = vpop.permute.xlu0 %249
        %251 = vrot.lane.b32.xlu0 %v177, 110
        %v252 = vpop.permute.xlu0 %251
        %253 = vrot.lane.b32.xlu0 %v178, 110
        %v254 = vpop.permute.xlu0 %253
        %vm255 = vcmask 900096
        %v256 = vsel %vm255, %v250, %v252
        %v257 = vsel %vm255, %v252, %v254
        %v260 = vsel %vm218, %v256, 0.0
        %v261 = vsel %vm219, %v257, 0.0
        %262 = vrot.lane.b32.xlu0 %v176, 96
        %v263 = vpop.permute.xlu0 %262
        %264 = vrot.lane.b32.xlu0 %v177, 96
        %v265 = vpop.permute.xlu0 %264
        %266 = vrot.lane.b32.xlu0 %v178, 96
        %v267 = vpop.permute.xlu0 %266
        %vm268 = vcmask 785408
        %v269 = vsel %vm268, %v263, %v265
        %v270 = vsel %vm268, %v265, %v267
        %v273 = vsel %vm212, %v269, 0.0
        %v274 = vsel %vm213, %v270, 0.0
        %275 = vrot.lane.b32.xlu0 %v176, 94
        %v276 = vpop.permute.xlu0 %275
        %277 = vrot.lane.b32.xlu0 %v177, 94
        %v278 = vpop.permute.xlu0 %277
        %279 = vrot.lane.b32.xlu0 %v178, 94
        %v280 = vpop.permute.xlu0 %279
        %vm281 = vcmask 769024
        %v282 = vsel %vm281, %v276, %v278
        %v283 = vsel %vm281, %v278, %v280
        %v286 = vsel %vm218, %v282, 0.0
        %v287 = vsel %vm219, %v283, 0.0
        %288 = vrot.lane.b32.xlu0 %v176, 127
        %v289 = vpop.permute.xlu0 %288
        %290 = vrot.lane.b32.xlu0 %v177, 127
        %v291 = vpop.permute.xlu0 %290
        %292 = vrot.lane.b32.xlu0 %v178, 127
        %v293 = vpop.permute.xlu0 %292
        %vm294 = vcmask 1039360
        %v295 = vsel %vm294, %v289, %v291
        %v296 = vsel %vm294, %v291, %v293
        %299 = vrot.lane.b32.xlu0 %v176, 111
        %v300 = vpop.permute.xlu0 %299
        %301 = vrot.lane.b32.xlu0 %v177, 111
        %v302 = vpop.permute.xlu0 %301
        %303 = vrot.lane.b32.xlu0 %v178, 111
        %v304 = vpop.permute.xlu0 %303
        %vm305 = vcmask 908288
        %v306 = vsel %vm305, %v300, %v302
        %v307 = vsel %vm305, %v302, %v304
        %310 = vrot.lane.b32.xlu0 %v176, 95
        %v311 = vpop.permute.xlu0 %310
        %312 = vrot.lane.b32.xlu0 %v177, 95
        %v313 = vpop.permute.xlu0 %312
        %314 = vrot.lane.b32.xlu0 %v178, 95
        %v315 = vpop.permute.xlu0 %314
        %vm316 = vcmask 777216
        %v317 = vsel %vm316, %v311, %v313
        %v318 = vsel %vm316, %v313, %v315
        %v321 = vpack.c.bf16 %v295, %v214
        %v322 = vpack.c.bf16 %v296, %v215
        %v323 = vpack.c.bf16 %v247, %v234
        %v324 = vpack.c.bf16 %v248, %v235
        %v325 = vpack.c.bf16 %v260, %v306
        %v326 = vpack.c.bf16 %v261, %v307
        %v327 = vpack.c.bf16 %v317, %v273
        %v328 = vpack.c.bf16 %v318, %v274
        %v329 = vpack.c.bf16 %v286, %v286
        %v330 = vpack.c.bf16 %v287, %v287
        %v331 = vld [vmem:[#allocation5] sm:$0xf]
        %vm332 = vcmask 588800
        %v334 = vsel %vm332, %v331, 0
        %vm336 = vcmask 1043456
        %v338 = vsel %vm336, %v329, 0
        %v341 = vsel %vm336, %v330, 0
        %343 = vmatprep.subr.bf16.mxu0 %v322
        %344 = vmatpush1.bf16.msra.mxu0 %v321
        %345 = vmatprep.subr.bf16.mxu0 %v324
        %346 = vmatpush1.bf16.msra.mxu0 %v323
        %347 = vmatprep.subr.bf16.mxu0 %v326
        %348 = vmatpush1.bf16.msra.mxu0 %v325
        %349 = vmatprep.subr.bf16.mxu0 %v328
        %350 = vmatpush1.bf16.msra.mxu0 %v327
        %351 = vmatprep.subr.bf16.mxu0 %v341
        %352 = vmatpush1.bf16.msra.mxu0 %v338
        %353 = vmatprep.subr.bf16.mxu0 0
        %354 = vmatpush1.bf16.msra.mxu0 0
        %355 = vmatprep.subr.bf16.mxu0 0
        %356 = vmatpush1.bf16.msra.mxu0 0
        %357 = vmatprep.subr.bf16.mxu0 0
        %358 = vmatpush1.bf16.msra.mxu0 0
        %359 = vmatprep.subr.bf16.mxu0 0
        %360 = vmatpush1.bf16.msra.mxu0 0
        %361 = vmatprep.subr.bf16.mxu0 0
        %362 = vmatpush1.bf16.msra.mxu0 0
        %363 = vmatprep.subr.bf16.mxu0 0
        %364 = vmatpush1.bf16.msra.mxu0 0
        %365 = vmatprep.subr.bf16.mxu0 0
        %366 = vmatpush1.bf16.msra.mxu0 0
        %367 = vmatprep.subr.bf16.mxu0 0
        %368 = vmatpush1.bf16.msra.mxu0 0
        %369 = vmatprep.subr.bf16.mxu0 0
        %370 = vmatpush1.bf16.msra.mxu0 0
        %371 = vmatprep.subr.bf16.mxu0 0
        %372 = vmatpush1.bf16.msra.mxu0 0
        %373 = vmatprep.subr.bf16.mxu0 0
        %374 = vmatpush1.bf16.msra.mxu0 0
        %375 = vmatprep.mubr.bf16.mxu0 0
        %376 = vmatmul.mubr.bf16.gmra.mrb[0].mxu0 %v334
        %v377 = vpop.f32.mrb[0].mxu0
        %v378 = vadd.f32 0.0, %v377
        %v379 = vpop.f32.mrb[0].mxu0
        %v380 = vadd.f32 0.0, %v379
        %v381 = vpop.f32.mrb[0].mxu0
        %v382 = vpop.f32.mrb[0].mxu0
        %383 = vdwg.mxu0
        %v384 = vmax.f32 %v378, 0.0
        %v385 = vmax.f32 %v380, 0.0
        %386 = vst [vmem:[%s172] sm:$0xff] %v384
        %387 = vst [vmem:[%s172 + $0x8] sm:$0xff] %v385
        %s388 = sand.u32 %s75, 1
        %s389 = scalar_lea.sflag [#allocation4], %s388
        %s390 = sand.u32 %s75, 1
        %s391 = smul.addr %s390, 16
        %s392 = scalar_lea.vmem [#allocation7], %s391
        // Predicated region
        $region37: #{tpu_custom_call.1} parent=27 // pred_check
          %p393 = pneg %p85
        $region38: #{tpu_custom_call.1} parent=27 // pred_check_branch
          %395 = sbr.rel (%p393) target = $region40
        $region39: #{tpu_custom_call.1} parent=27 // pred_region
          %s397 = ssub.s32 256, 256
          %398 = vsyncadd %s389, %s397
          %s399 = smul.addr %s20, 2
          %s400 = smul.addr %s399, 128
          %s401 = scalar_lea.hbm %s2, %s400
          %s403 = sshll.u32 %s392, 4
          %s404 = int_to_ptr.vmem [resolvable:$true] %s403
          %406 = dma.vmem_to_hbm [thread:$0]  %s404, 256, %s401, %s389
        $region40: #{tpu_custom_call.1} parent=27 // pred_fallthru
          _
      $region28: #{tpu_custom_call.1} parent=5 // pred_fallthru
        _
      %p407 = scmp.le.s32.totalorder 2, %s15
      // Predicated region
      $region41: #{tpu_custom_call.1} parent=5 // pred_check
        %p408 = pneg %p407
      $region42: #{tpu_custom_call.1} parent=5 // pred_check_branch
        %410 = sbr.rel (%p408) target = $region44
      $region43: #{tpu_custom_call.1} parent=5 // pred_region
        %s411 = ssub.s32 %s15, 2
        // Predicated region
        $region45: #{tpu_custom_call.1} parent=43 // pred_check
          %p412 = pneg %p91
        $region46: #{tpu_custom_call.1} parent=43 // pred_check_branch
          %414 = sbr.rel (%p412) target = $region48
        $region47: #{tpu_custom_call.1} parent=43 // pred_region
          %s415 = sand.u32 %s76, 1
          %s416 = scalar_lea.sflag [#allocation4], %s415
          %s417 = sand.u32 %s76, 1
          %s418 = smul.addr %s417, 16
          %s419 = scalar_lea.vmem [#allocation7], %s418
          %420 = dma.done %s416, 256
        $region48: #{tpu_custom_call.1} parent=43 // pred_fallthru
          _
      $region44: #{tpu_custom_call.1} parent=5 // pred_fallthru
        _
    $region6: #{tpu_custom_call.1} parent=1 // loop_footer
      %s19 = sadd.s32 1, %s15
    $region7: #{tpu_custom_call.1} parent=1 // loop_footer_branch
      %14 = sbr.rel target = $region3
    $region8: #{tpu_custom_call.1} parent=1 // loop_exit
      _
    %421 = vsyncpa [#allocation3], 1
    %s422 = scalar_lea.sflag [#allocation3], 1
    %423 = vsyncpa %s422, 1
    %424 = vsyncpa [#allocation6], 1
    %425 = vsyncpa [#allocation4], 1
    %s426 = scalar_lea.sflag [#allocation4], 1
    %427 = vsyncpa %s426, 1

</llo_original>
